<compile_context>
chip_gen: v6e
topology: v6e:2x2x1
jax: 0.10.0
libtpu: 0.0.40
codegen_flags: <defaults>
</compile_context>

<pallas_src>
import jax
import jax.numpy as jnp
from jax import lax
from jax.experimental import pallas as pl
from jax.experimental.pallas import tpu as pltpu


# ---------------------------------------------------------------------------
# Kernel: one batch element per grid step, fully fused
# ---------------------------------------------------------------------------
def embedding_kernel(x_ref, w_ref, out_ref, pad_ref):
    """Fused: sum(ch0, ch1) -> 3x3 conv -> sigmoid -> + sum -> concat with x.

    x_ref:   (1, C, H, W)    one batch element (VMEM)
    w_ref:   (9,)            3x3 conv taps, row-major (SMEM scalars)
    out_ref: (1, C+1, H, W)  pass-through channels + result channel
    pad_ref: (H+2, W+2)      VMEM scratch: zero-padded sum plane (1px halo)
    """
    C = x_ref.shape[1]
    H, W = x_ref.shape[2], x_ref.shape[3]

    # sum_tensor = x[:, 0:1] + x[:, 1:2]  (a single spatial plane per element)
    s = x_ref[0, 0] + x_ref[0, 1]                       # (H, W)

    # Build the SAME-padded plane in VMEM scratch (no HBM pad pass).
    pad_ref[...] = jnp.zeros_like(pad_ref)
    pad_ref[1:H + 1, 1:W + 1] = s
    xp = pad_ref[...]                                   # (H+2, W+2)

    # 3x3 conv with Cin = Cout = 1 == 9-tap stencil with scalar weights.
    # (An MXU matmul with K = N = 1 would waste the systolic array; this is
    #  pure VPU multiply-accumulate work.)
    acc = jnp.zeros((H, W), jnp.float32)
    for dh in range(3):
        for dw in range(3):
            acc = acc + w_ref[dh * 3 + dw] * xp[dh:dh + H, dw:dw + W]

    mask = 1.0 / (1.0 + jnp.exp(-acc))                  # sigmoid (EUP)
    result = s + mask

    # concat([x, result], dim=1) done directly into the output block.
    out_ref[0, 0:C] = x_ref[0]
    out_ref[0, C] = result.astype(out_ref.dtype)


# ---------------------------------------------------------------------------
# Wrapper
# ---------------------------------------------------------------------------
def embedding_forward(x_nchw, conv_w):
    """x_nchw: (N, C, H, W) with C >= 2; conv_w: (1, 1, 3, 3) PyTorch OIHW."""
    N, C, H, W = x_nchw.shape
    assert C >= 2, "forward() sums channels 0 and 1; need C >= 2"
    w9 = conv_w.reshape(9).astype(jnp.float32)          # 9 scalar taps -> SMEM

    return pl.pallas_call(
        embedding_kernel,
        out_shape=jax.ShapeDtypeStruct((N, C + 1, H, W), x_nchw.dtype),
        grid=(N,),
        in_specs=[
            pl.BlockSpec((1, C, H, W), lambda n: (n, 0, 0, 0)),
            pl.BlockSpec(memory_space=pltpu.MemorySpace.SMEM),
        ],
        out_specs=pl.BlockSpec((1, C + 1, H, W), lambda n: (n, 0, 0, 0)),
        scratch_shapes=[pltpu.VMEM((H + 2, W + 2), jnp.float32)],
        compiler_params=pltpu.CompilerParams(
            dimension_semantics=("parallel",)),
    )(x_nchw, w9)


# ---------------------------------------------------------------------------
# Pure-JAX reference for correctness checking
# ---------------------------------------------------------------------------
def reference_forward(x, conv_w):
    s = x[:, 0:1] + x[:, 1:2]
    conv = lax.conv_general_dilated(
        s, conv_w, window_strides=(1, 1), padding=((1, 1), (1, 1)),
        dimension_numbers=("NCHW", "OIHW", "NCHW"))
    mask = jax.nn.sigmoid(conv)
    return jnp.concatenate([x, s + mask], axis=1)


if __name__ == "__main__":
    key = jax.random.PRNGKey(0)
    k_x, k_w = jax.random.split(key)

    N, C, H, W = 2, 4, 16, 16
    x = jax.random.normal(k_x, (N, C, H, W), jnp.float32)
    conv_w = 0.3 * jax.random.normal(k_w, (1, 1, 3, 3), jnp.float32)

    out = embedding_forward(x, conv_w)
    out = jax.block_until_ready(out)

    ref = reference_forward(x, conv_w)
    assert out.shape == (N, C + 1, H, W), out.shape
    assert jnp.allclose(out, ref, atol=1e-5, rtol=1e-4), (
        float(jnp.max(jnp.abs(out - ref))))

    print("KERNEL_OK")
</pallas_src>

<mosaic_0001>
module attributes {stable_mosaic.version = 11 : i64} {
  func.func @embedding_kernel(%arg0: i32, %arg1: memref<1x4x16x16xf32, #tpu.memory_space<vmem>>, %arg2: memref<9xf32, #tpu.memory_space<smem>>, %arg3: memref<1x5x16x16xf32, #tpu.memory_space<vmem>>, %arg4: memref<18x18xf32, #tpu.memory_space<vmem>>) attributes {dimension_semantics = [#tpu.dimension_semantics<parallel>], iteration_bounds = array<i64: 2>, scalar_prefetch = 0 : i64, scratch_operands = 1 : i64, tpu.core_type = #tpu.core_type<tc>, window_params = [{transform_indices = @transform_0, window_bounds = array<i64: 1, 4, 16, 16>}, {transform_indices = @transform_1, window_bounds = array<i64: 9>}, {transform_indices = @transform_2, window_bounds = array<i64: 1, 5, 16, 16>}]} {
    %c0 = arith.constant 0 : index
    %c0_0 = arith.constant 0 : index
    %c0_1 = arith.constant 0 : index
    %c0_2 = arith.constant 0 : index
    %0 = vector.load %arg1[%c0, %c0_0, %c0_1, %c0_2] : memref<1x4x16x16xf32, #tpu.memory_space<vmem>>, vector<1x1x16x16xf32>
    %1 = vector.shape_cast %0 : vector<1x1x16x16xf32> to vector<16x16xf32>
    %c0_3 = arith.constant 0 : index
    %c1 = arith.constant 1 : index
    %c0_4 = arith.constant 0 : index
    %c0_5 = arith.constant 0 : index
    %2 = vector.load %arg1[%c0_3, %c1, %c0_4, %c0_5] : memref<1x4x16x16xf32, #tpu.memory_space<vmem>>, vector<1x1x16x16xf32>
    %3 = vector.shape_cast %2 : vector<1x1x16x16xf32> to vector<16x16xf32>
    %4 = arith.addf %1, %3 : vector<16x16xf32>
    %cst = arith.constant 0.000000e+00 : f32
    %5 = vector.broadcast %cst : f32 to vector<18x18xf32>
    %c0_6 = arith.constant 0 : index
    %c0_7 = arith.constant 0 : index
    %6 = vector.load %arg4[%c0_6, %c0_7] : memref<18x18xf32, #tpu.memory_space<vmem>>, vector<18x18xf32>
    tpu.vector_store %arg4[%c0_6, %c0_7], %5 {strides = array<i32>} : memref<18x18xf32, #tpu.memory_space<vmem>>, vector<18x18xf32>,
    %c1_8 = arith.constant 1 : index
    %c1_9 = arith.constant 1 : index
    %7 = vector.load %arg4[%c1_8, %c1_9] : memref<18x18xf32, #tpu.memory_space<vmem>>, vector<16x16xf32>
    tpu.vector_store %arg4[%c1_8, %c1_9], %4 {strides = array<i32>} : memref<18x18xf32, #tpu.memory_space<vmem>>, vector<16x16xf32>,
    %c0_10 = arith.constant 0 : index
    %c0_11 = arith.constant 0 : index
    %8 = vector.load %arg4[%c0_10, %c0_11] : memref<18x18xf32, #tpu.memory_space<vmem>>, vector<18x18xf32>
    %cst_12 = arith.constant 0.000000e+00 : f32
    %9 = vector.broadcast %cst_12 : f32 to vector<16x16xf32>
    %c0_13 = arith.constant 0 : index
    %10 = memref.load %arg2[%c0_13] : memref<9xf32, #tpu.memory_space<smem>>
    %11 = vector.extract_strided_slice %8 {offsets = [0, 0], sizes = [16, 16], strides = [1, 1]} : vector<18x18xf32> to vector<16x16xf32>
    %12 = vector.broadcast %10 : f32 to vector<16x16xf32>
    %13 = arith.mulf %12, %11 : vector<16x16xf32>
    %14 = arith.addf %9, %13 : vector<16x16xf32>
    %c1_14 = arith.constant 1 : index
    %15 = memref.load %arg2[%c1_14] : memref<9xf32, #tpu.memory_space<smem>>
    %16 = vector.extract_strided_slice %8 {offsets = [0, 1], sizes = [16, 16], strides = [1, 1]} : vector<18x18xf32> to vector<16x16xf32>
    %17 = vector.broadcast %15 : f32 to vector<16x16xf32>
    %18 = arith.mulf %17, %16 : vector<16x16xf32>
    %19 = arith.addf %14, %18 : vector<16x16xf32>
    %c2 = arith.constant 2 : index
    %20 = memref.load %arg2[%c2] : memref<9xf32, #tpu.memory_space<smem>>
    %21 = vector.extract_strided_slice %8 {offsets = [0, 2], sizes = [16, 16], strides = [1, 1]} : vector<18x18xf32> to vector<16x16xf32>
    %22 = vector.broadcast %20 : f32 to vector<16x16xf32>
    %23 = arith.mulf %22, %21 : vector<16x16xf32>
    %24 = arith.addf %19, %23 : vector<16x16xf32>
    %c3 = arith.constant 3 : index
    %25 = memref.load %arg2[%c3] : memref<9xf32, #tpu.memory_space<smem>>
    %26 = vector.extract_strided_slice %8 {offsets = [1, 0], sizes = [16, 16], strides = [1, 1]} : vector<18x18xf32> to vector<16x16xf32>
    %27 = vector.broadcast %25 : f32 to vector<16x16xf32>
    %28 = arith.mulf %27, %26 : vector<16x16xf32>
    %29 = arith.addf %24, %28 : vector<16x16xf32>
    %c4 = arith.constant 4 : index
    %30 = memref.load %arg2[%c4] : memref<9xf32, #tpu.memory_space<smem>>
    %31 = vector.extract_strided_slice %8 {offsets = [1, 1], sizes = [16, 16], strides = [1, 1]} : vector<18x18xf32> to vector<16x16xf32>
    %32 = vector.broadcast %30 : f32 to vector<16x16xf32>
    %33 = arith.mulf %32, %31 : vector<16x16xf32>
    %34 = arith.addf %29, %33 : vector<16x16xf32>
    %c5 = arith.constant 5 : index
    %35 = memref.load %arg2[%c5] : memref<9xf32, #tpu.memory_space<smem>>
    %36 = vector.extract_strided_slice %8 {offsets = [1, 2], sizes = [16, 16], strides = [1, 1]} : vector<18x18xf32> to vector<16x16xf32>
    %37 = vector.broadcast %35 : f32 to vector<16x16xf32>
    %38 = arith.mulf %37, %36 : vector<16x16xf32>
    %39 = arith.addf %34, %38 : vector<16x16xf32>
    %c6 = arith.constant 6 : index
    %40 = memref.load %arg2[%c6] : memref<9xf32, #tpu.memory_space<smem>>
    %41 = vector.extract_strided_slice %8 {offsets = [2, 0], sizes = [16, 16], strides = [1, 1]} : vector<18x18xf32> to vector<16x16xf32>
    %42 = vector.broadcast %40 : f32 to vector<16x16xf32>
    %43 = arith.mulf %42, %41 : vector<16x16xf32>
    %44 = arith.addf %39, %43 : vector<16x16xf32>
    %c7 = arith.constant 7 : index
    %45 = memref.load %arg2[%c7] : memref<9xf32, #tpu.memory_space<smem>>
    %46 = vector.extract_strided_slice %8 {offsets = [2, 1], sizes = [16, 16], strides = [1, 1]} : vector<18x18xf32> to vector<16x16xf32>
    %47 = vector.broadcast %45 : f32 to vector<16x16xf32>
    %48 = arith.mulf %47, %46 : vector<16x16xf32>
    %49 = arith.addf %44, %48 : vector<16x16xf32>
    %c8 = arith.constant 8 : index
    %50 = memref.load %arg2[%c8] : memref<9xf32, #tpu.memory_space<smem>>
    %51 = vector.extract_strided_slice %8 {offsets = [2, 2], sizes = [16, 16], strides = [1, 1]} : vector<18x18xf32> to vector<16x16xf32>
    %52 = vector.broadcast %50 : f32 to vector<16x16xf32>
    %53 = arith.mulf %52, %51 : vector<16x16xf32>
    %54 = arith.addf %49, %53 : vector<16x16xf32>
    %cst_15 = arith.constant 0.000000e+00 : f32
    %55 = vector.broadcast %cst_15 : f32 to vector<16x16xf32>
    %56 = arith.subf %55, %54 : vector<16x16xf32>
    %57 = math.exp %56 : vector<16x16xf32>
    %cst_16 = arith.constant 1.000000e+00 : f32
    %58 = vector.broadcast %cst_16 : f32 to vector<16x16xf32>
    %59 = arith.addf %58, %57 : vector<16x16xf32>
    %cst_17 = arith.constant 1.000000e+00 : f32
    %60 = vector.broadcast %cst_17 : f32 to vector<16x16xf32>
    %61 = arith.divf %60, %59 : vector<16x16xf32>
    %62 = arith.addf %4, %61 : vector<16x16xf32>
    %c0_18 = arith.constant 0 : index
    %c0_19 = arith.constant 0 : index
    %c0_20 = arith.constant 0 : index
    %c0_21 = arith.constant 0 : index
    %63 = vector.load %arg1[%c0_18, %c0_19, %c0_20, %c0_21] : memref<1x4x16x16xf32, #tpu.memory_space<vmem>>, vector<1x4x16x16xf32>
    %64 = vector.shape_cast %63 : vector<1x4x16x16xf32> to vector<4x16x16xf32>
    %c0_22 = arith.constant 0 : index
    %c0_23 = arith.constant 0 : index
    %c0_24 = arith.constant 0 : index
    %c0_25 = arith.constant 0 : index
    %65 = vector.load %arg3[%c0_22, %c0_23, %c0_24, %c0_25] : memref<1x5x16x16xf32, #tpu.memory_space<vmem>>, vector<1x4x16x16xf32>
    %66 = vector.shape_cast %65 : vector<1x4x16x16xf32> to vector<4x16x16xf32>
    %67 = vector.shape_cast %64 : vector<4x16x16xf32> to vector<1x4x16x16xf32>
    tpu.vector_store %arg3[%c0_22, %c0_23, %c0_24, %c0_25], %67 {strides = array<i32>} : memref<1x5x16x16xf32, #tpu.memory_space<vmem>>, vector<1x4x16x16xf32>,
    %c0_26 = arith.constant 0 : index
    %c4_27 = arith.constant 4 : index
    %c0_28 = arith.constant 0 : index
    %c0_29 = arith.constant 0 : index
    %68 = vector.load %arg3[%c0_26, %c4_27, %c0_28, %c0_29] : memref<1x5x16x16xf32, #tpu.memory_space<vmem>>, vector<1x1x16x16xf32>
    %69 = vector.shape_cast %68 : vector<1x1x16x16xf32> to vector<16x16xf32>
    %70 = vector.shape_cast %62 : vector<16x16xf32> to vector<1x1x16x16xf32>
    tpu.vector_store %arg3[%c0_26, %c4_27, %c0_28, %c0_29], %70 {strides = array<i32>} : memref<1x5x16x16xf32, #tpu.memory_space<vmem>>, vector<1x1x16x16xf32>,
    return
  }
  func.func @transform_0(%arg0: i32) -> (i32, i32, i32, i32) {
    %c0_i32 = arith.constant 0 : i32
    %c0_i32_0 = arith.constant 0 : i32
    %c0_i32_1 = arith.constant 0 : i32
    %c0_i32_2 = arith.constant 0 : i32
    return %arg0, %c0_i32, %c0_i32_0, %c0_i32_1 : i32, i32, i32, i32
  }
  func.func @transform_1(%arg0: i32) -> i32 {
    %c0_i32 = arith.constant 0 : i32
    %c0_i32_0 = arith.constant 0 : i32
    return %c0_i32 : i32
  }
  func.func @transform_2(%arg0: i32) -> (i32, i32, i32, i32) {
    %c0_i32 = arith.constant 0 : i32
    %c0_i32_0 = arith.constant 0 : i32
    %c0_i32_1 = arith.constant 0 : i32
    %c0_i32_2 = arith.constant 0 : i32
    return %arg0, %c0_i32, %c0_i32_0, %c0_i32_1 : i32, i32, i32, i32
  }
}

</mosaic_0001>

<llo_original>
// kernel: tpu_custom_call.1
$region0: #{tpu_custom_call.1}
  #allocation0 [shape = 'u32[]', space=smem, size = 0x4, offset = 0x4, fixed_abs, tag = 'smem constant byte address 0x4 - core index']
  #allocation1 [shape = 'u32[144,128]{1,0:T(1,128)}', space=vmem, size = 0x12000, scoped, tag = 'internal scratch']
  #allocation2 [shape = 'f32[18,18]{1,0:T(8,128)}', space=vmem, size = 0x3000, scoped, tag = 'scratch operand']
  %s0 = inlined_call_operand.hbm [shape: f32[2,4,16,16], index: 0, kind: input, shape index: {}]
  %s1 = inlined_call_operand.vmem [shape: f32[9], index: 1, kind: input, shape index: {}]
  %s2 = inlined_call_operand.hbm [shape: f32[2,5,16,16], index: 2, kind: output, shape index: {}]
  %s3 = sld [smem:[#allocation0]]
  $region49: #{tpu_custom_call.1} parent=0
    _
  %s5 = ssub.s32 1, %s3
  %s6 = scalar_select 0, %s5, %s3
  $region1: #{tpu_custom_call.1} parent=0
    #allocation3 [shape = 'u8[65536]{0}', space=vmem, size = 0x10000, scoped, tag = 'input window, operand 0']
    #allocation4 [shape = 's32[2]{0}', space=sflag, size = 0x8, scoped, tag = 'scoped memory for tpu_custom_call.1']
    #allocation5 [shape = 's32[2]{0}', space=sflag, size = 0x8, scoped, tag = 'scoped memory for tpu_custom_call.1']
    #allocation6 [shape = 's32[2]{0}', space=sflag, size = 0x8, scoped, tag = 'scoped memory for tpu_custom_call.1']
    #allocation7 [shape = 'u8[512]{0}', space=smem, size = 0x200, scoped, tag = 'input window, operand 1, single buffered']
    #allocation8 [shape = 'u8[81920]{0}', space=vmem, size = 0x14000, scoped, tag = 'output window, operand 0']
    %7 = vsyncpa [#allocation4], 0
    %s8 = scalar_lea.sflag [#allocation4], 1
    %9 = vsyncpa %s8, 0
    %10 = vsyncpa [#allocation6], 0
    %11 = vsyncpa [#allocation5], 0
    %s12 = scalar_lea.sflag [#allocation5], 1
    %13 = vsyncpa %s12, 0
    loop: start=0, step=1, limit=4
    $region2: #{tpu_custom_call.1} parent=1 // loop_pre_header
      _
    $region3: #{tpu_custom_call.1} parent=1 // loop_header
      %s15 = sphi 0, %s19
      %p16 = scmp.ge.s32.totalorder %s15, 4
      %s25 = sphi 0, %s27
      %s28 = sphi 0, %s25
      %s29 = sphi 0, %s28
      %s45 = sphi 0, %s29
      %s49 = sphi 0, %s49
      %s51 = sphi 0, %s49
      %s52 = sphi 0, %s51
      %s66 = sphi 0, %s52
      %s72 = sphi 0, %s74
      %s75 = sphi 0, %s72
      %s76 = sphi 0, %s75
      %s92 = sphi 0, %s76
    $region4: #{tpu_custom_call.1} parent=1 // loop_header_branch
      %18 = sbr.rel (%p16) target = $region8
    $region5: #{tpu_custom_call.1} parent=1 // loop_body
      %s20 = ssub.s32 %s15, 1
      %s21 = ssub.s32 %s15, 2
      %s22 = sadd.s32 %s15, 1
      %s23 = ssub.s32 %s15, %s22
      %p24 = scmp.eq.s32.totalorder %s23, 0
      %s26 = sadd.s32 %s25, 1
      %s27 = scalar_select %p24, %s25, %s26
      %p30 = pneg %p24
      %p31 = scmp.eq.s32.totalorder %s15, 1
      %p32 = por %p30, %p31
      %p33 = scmp.ne.s32.totalorder %s25, %s28
      %p34 = scmp.eq.s32.totalorder %s15, 0
      %p35 = por %p33, %p34
      %p36 = scmp.ne.s32.totalorder %s25, %s28
      %p37 = scmp.eq.s32.totalorder %s20, 1
      %p38 = por %p36, %p37
      %p39 = scmp.ne.s32.totalorder %s28, %s29
      %p40 = scmp.eq.s32.totalorder %s20, 0
      %p41 = por %p39, %p40
      %p42 = scmp.ne.s32.totalorder %s28, %s29
      %p43 = scmp.eq.s32.totalorder %s21, 1
      %p44 = por %p42, %p43
      %p46 = scmp.ne.s32.totalorder %s29, %s45
      %p47 = scmp.eq.s32.totalorder %s21, 0
      %p48 = por %p46, %p47
      %s50 = sadd.s32 %s49, 1
      %p53 = scmp.eq.s32.totalorder %s15, 1
      %p54 = scmp.ne.s32.totalorder %s49, %s51
      %p55 = scmp.eq.s32.totalorder %s15, 0
      %p56 = por %p54, %p55
      %p57 = scmp.ne.s32.totalorder %s49, %s51
      %p58 = scmp.eq.s32.totalorder %s20, 1
      %p59 = por %p57, %p58
      %p60 = scmp.ne.s32.totalorder %s51, %s52
      %p61 = scmp.eq.s32.totalorder %s20, 0
      %p62 = por %p60, %p61
      %p63 = scmp.ne.s32.totalorder %s51, %s52
      %p64 = scmp.eq.s32.totalorder %s21, 1
      %p65 = por %p63, %p64
      %p67 = scmp.ne.s32.totalorder %s52, %s66
      %p68 = scmp.eq.s32.totalorder %s21, 0
      %p69 = por %p67, %p68
      %s70 = ssub.s32 %s15, %s22
      %p71 = scmp.eq.s32.totalorder %s70, 0
      %s73 = sadd.s32 %s72, 1
      %s74 = scalar_select %p71, %s72, %s73
      %p77 = pneg %p71
      %p78 = scmp.eq.s32.totalorder %s15, 1
      %p79 = por %p77, %p78
      %p80 = scmp.ne.s32.totalorder %s72, %s75
      %p81 = scmp.eq.s32.totalorder %s15, 0
      %p82 = por %p80, %p81
      %p83 = scmp.ne.s32.totalorder %s72, %s75
      %p84 = scmp.eq.s32.totalorder %s20, 1
      %p85 = por %p83, %p84
      %p86 = scmp.ne.s32.totalorder %s75, %s76
      %p87 = scmp.eq.s32.totalorder %s20, 0
      %p88 = por %p86, %p87
      %p89 = scmp.ne.s32.totalorder %s75, %s76
      %p90 = scmp.eq.s32.totalorder %s21, 1
      %p91 = por %p89, %p90
      %p93 = scmp.ne.s32.totalorder %s76, %s92
      %p94 = scmp.eq.s32.totalorder %s21, 0
      %p95 = por %p93, %p94
      %p96 = scmp.le.s32.totalorder 1, %s15
      %p97 = scmp.lt.s32.totalorder %s15, 3
      %p98 = pnand %p96, %p97
      %p99 = pneg %p98
      // Predicated region
      $region9: #{tpu_custom_call.1} parent=5 // pred_check
        _
      $region10: #{tpu_custom_call.1} parent=5 // pred_check_branch
        %101 = sbr.rel (%p98) target = $region12
      $region11: #{tpu_custom_call.1} parent=5 // pred_region
        %s102 = ssub.s32 %s15, 1
        // Predicated region
        $region13: #{tpu_custom_call.1} parent=11 // pred_check
          %p103 = pneg %p62
        $region14: #{tpu_custom_call.1} parent=11 // pred_check_branch
          %105 = sbr.rel (%p103) target = $region16
        $region15: #{tpu_custom_call.1} parent=11 // pred_region
          %s107 = ssub.s32 16, 16
          %108 = vsyncadd [#allocation6], %s107
          %s110 = sshll.u32 %s1, 4
          %s111 = int_to_ptr.vmem [resolvable:$true] %s110
          %113 = dma.vmem_to_smem %s111, 16, [#allocation7], [#allocation6]
        $region16: #{tpu_custom_call.1} parent=11 // pred_fallthru
          _
      $region12: #{tpu_custom_call.1} parent=5 // pred_fallthru
        _
      %p114 = scmp.lt.s32.totalorder %s15, 2
      // Predicated region
      $region17: #{tpu_custom_call.1} parent=5 // pred_check
        %p115 = pneg %p114
      $region18: #{tpu_custom_call.1} parent=5 // pred_check_branch
        %117 = sbr.rel (%p115) target = $region20
      $region19: #{tpu_custom_call.1} parent=5 // pred_region
        // Predicated region
        $region21: #{tpu_custom_call.1} parent=19 // pred_check
          %p118 = pneg %p35
        $region22: #{tpu_custom_call.1} parent=19 // pred_check_branch
          %120 = sbr.rel (%p118) target = $region24
        $region23: #{tpu_custom_call.1} parent=19 // pred_region
          %s121 = sand.u32 %s25, 1
          %s122 = scalar_lea.sflag [#allocation4], %s121
          %s123 = sand.u32 %s25, 1
          %s124 = smul.addr %s123, 64
          %s125 = scalar_lea.vmem [#allocation3], %s124
          %s127 = ssub.s32 1024, 1024
          %128 = vsyncadd %s122, %s127
          %s129 = smul.addr %s15, 8
          %s130 = smul.addr %s129, 128
          %s131 = scalar_lea.hbm %s0, %s130
          %s132 = sshll.u32 %s125, 4
          %s133 = int_to_ptr.vmem [resolvable:$true] %s132
          %138 = dma.hbm_to_vmem [thread:$0]  %s131, 1024, %s133, %s122, 128, 128, 8
        $region24: #{tpu_custom_call.1} parent=19 // pred_fallthru
          _
      $region20: #{tpu_custom_call.1} parent=5 // pred_fallthru
        _
      %p139 = scmp.le.s32.totalorder 1, %s15
      %p140 = scmp.lt.s32.totalorder %s15, 3
      %p141 = pnand %p139, %p140
      %p142 = pneg %p141
      // Predicated region
      $region25: #{tpu_custom_call.1} parent=5 // pred_check
        _
      $region26: #{tpu_custom_call.1} parent=5 // pred_check_branch
        %144 = sbr.rel (%p141) target = $region28
      $region27: #{tpu_custom_call.1} parent=5 // pred_region
        %s145 = ssub.s32 %s15, 1
        %s146 = sand.u32 %s28, 1
        %s147 = scalar_lea.sflag [#allocation4], %s146
        %s148 = sand.u32 %s28, 1
        %s149 = smul.addr %s148, 64
        %s150 = scalar_lea.vmem [#allocation3], %s149
        // Predicated region
        $region29: #{tpu_custom_call.1} parent=27 // pred_check
          %p151 = pneg %p41
        $region30: #{tpu_custom_call.1} parent=27 // pred_check_branch
          %153 = sbr.rel (%p151) target = $region32
        $region31: #{tpu_custom_call.1} parent=27 // pred_region
          %154 = dma.done %s147, 1024
        $region32: #{tpu_custom_call.1} parent=27 // pred_fallthru
          _
        // Predicated region
        $region33: #{tpu_custom_call.1} parent=27 // pred_check
          %p155 = pneg %p62
        $region34: #{tpu_custom_call.1} parent=27 // pred_check_branch
          %157 = sbr.rel (%p155) target = $region36
        $region35: #{tpu_custom_call.1} parent=27 // pred_region
          %158 = dma.done [#allocation6], 16
        $region36: #{tpu_custom_call.1} parent=27 // pred_fallthru
          _
        %159 = sfence
        %s160 = sand.u32 %s28, 1
        %s161 = scalar_lea.sflag [#allocation4], %s160
        %s162 = sand.u32 %s28, 1
        %s163 = smul.addr %s162, 64
        %s164 = scalar_lea.vmem [#allocation3], %s163
        %p165 = pneg %p41
        %p166 = pneg %p38
        %p167 = pneg %p62
        %p168 = pneg %p59
        %p169 = pneg %p88
        %p170 = pneg %p85
        %s171 = sand.u32 %s75, 1
        %s172 = scalar_lea.sflag [#allocation5], %s171
        %s173 = sand.u32 %s75, 1
        %s174 = smul.addr %s173, 80
        %s175 = scalar_lea.vmem [#allocation8], %s174
        %v176 = vld [vmem:[%s150] sm:$0xff]
        %v177 = vld [vmem:[%s150 + $0x8] sm:$0xff]
        %s178 = scalar_lea.vmem %s150, 16 [#allocation3]
        %v179 = vld [vmem:[%s178] sm:$0xff]
        %v180 = vld [vmem:[%s178 + $0x8] sm:$0xff]
        %v181 = vadd.f32 %v176, %v179
        %v182 = vadd.f32 %v177, %v180
        %vm183 = vcmask 146432
        %184 = vst.msk [vmem:[#allocation2] sm:$0xff] %vm183, 0.0
        %185 = vst.msk [vmem:[#allocation2 + $0x8] sm:$0xff] %vm183, 0.0
        %vm186 = vcmask 140288
        %187 = vst.msk [vmem:[#allocation2 + $0x10] sm:$0x3] %vm186, 0.0
        %190 = vrot.lane.b32.xlu0 %v181, 1
        %v191 = vpop.permute.xlu0 %190
        %192 = vrot.lane.b32.xlu0 %v182, 1
        %v193 = vpop.permute.xlu0 %192
        %vm196 = vcmask 138248
        %197 = vst.msk [vmem:[#allocation2 + $0x1] sm:$0xff] %vm196, %v191
        %198 = vst.msk [vmem:[#allocation2 + $0x9] sm:$0xff] %vm196, %v193
        %v199 = vld [vmem:[#allocation2] sm:$0xff]
        %v200 = vld [vmem:[#allocation2 + $0x8] sm:$0xff]
        %v201 = vld [vmem:[#allocation2 + $0x10] sm:$0x3]
        %s202 = sld [smem:[#allocation7]]
        %v203 = vstv %s202
        %v204 = vmul.f32 %v203, %v199
        %v205 = vmul.f32 %v203, %v200
        %v206 = vadd.f32 %v204, 0.0
        %v207 = vadd.f32 %v205, 0.0
        %s208 = sld [smem:[#allocation7 + $0x1]]
        %v209 = vstv %s208
        %v210 = vmul.f32 %v209, %v199
        %v211 = vmul.f32 %v209, %v200
        %214 = vrot.lane.b32.xlu0 %v210, 127
        %v215 = vpop.permute.xlu0 %214
        %216 = vrot.lane.b32.xlu0 %v211, 127
        %v217 = vpop.permute.xlu0 %216
        %v220 = vadd.f32 %v206, %v215
        %v221 = vadd.f32 %v207, %v217
        %s222 = sld [smem:[#allocation7 + $0x2]]
        %v223 = vstv %s222
        %v224 = vmul.f32 %v223, %v199
        %v225 = vmul.f32 %v223, %v200
        %228 = vrot.lane.b32.xlu0 %v224, 126
        %v229 = vpop.permute.xlu0 %228
        %230 = vrot.lane.b32.xlu0 %v225, 126
        %v231 = vpop.permute.xlu0 %230
        %v234 = vadd.f32 %v220, %v229
        %v235 = vadd.f32 %v221, %v231
        %s236 = sld [smem:[#allocation7 + $0x3]]
        %v237 = vstv %s236
        %v238 = vmul.f32 %v237, %v199
        %v239 = vmul.f32 %v237, %v200
        %v240 = vmul.f32 %v237, %v201
        %vm244 = vcmask 1046528
        %v245 = vrot.slane %v238, 1
        %v246 = vrot.slane %v239, 1
        %v247 = vsel %vm244, %v245, %v246
        %v248 = vrot.slane %v240, 1
        %v249 = vsel %vm244, %v246, %v248
        %v252 = vadd.f32 %v234, %v247
        %v253 = vadd.f32 %v235, %v249
        %s254 = sld [smem:[#allocation7 + $0x4]]
        %v255 = vstv %s254
        %v256 = vmul.f32 %v255, %v199
        %v257 = vmul.f32 %v255, %v200
        %v258 = vmul.f32 %v255, %v201
        %v262 = vrot.slane %v256, 1
        %v263 = vrot.slane %v257, 1
        %v264 = vsel %vm244, %v262, %v263
        %v265 = vrot.slane %v258, 1
        %v266 = vsel %vm244, %v263, %v265
        %267 = vrot.lane.b32.xlu0 %v264, 127
        %v268 = vpop.permute.xlu0 %267
        %269 = vrot.lane.b32.xlu0 %v266, 127
        %v270 = vpop.permute.xlu0 %269
        %v273 = vadd.f32 %v252, %v268
        %v274 = vadd.f32 %v253, %v270
        %s275 = sld [smem:[#allocation7 + $0x5]]
        %v276 = vstv %s275
        %v277 = vmul.f32 %v276, %v199
        %v278 = vmul.f32 %v276, %v200
        %v279 = vmul.f32 %v276, %v201
        %v283 = vrot.slane %v277, 1
        %v284 = vrot.slane %v278, 1
        %v285 = vsel %vm244, %v283, %v284
        %v286 = vrot.slane %v279, 1
        %v287 = vsel %vm244, %v284, %v286
        %288 = vrot.lane.b32.xlu0 %v285, 126
        %v289 = vpop.permute.xlu0 %288
        %290 = vrot.lane.b32.xlu0 %v287, 126
        %v291 = vpop.permute.xlu0 %290
        %v294 = vadd.f32 %v273, %v289
        %v295 = vadd.f32 %v274, %v291
        %s296 = sld [smem:[#allocation7 + $0x6]]
        %v297 = vstv %s296
        %v298 = vmul.f32 %v297, %v199
        %v299 = vmul.f32 %v297, %v200
        %v300 = vmul.f32 %v297, %v201
        %vm304 = vcmask 1045504
        %v305 = vrot.slane %v298, 2
        %v306 = vrot.slane %v299, 2
        %v307 = vsel %vm304, %v305, %v306
        %v308 = vrot.slane %v300, 2
        %v309 = vsel %vm304, %v306, %v308
        %v312 = vadd.f32 %v294, %v307
        %v313 = vadd.f32 %v295, %v309
        %s314 = sld [smem:[#allocation7 + $0x7]]
        %v315 = vstv %s314
        %v316 = vmul.f32 %v315, %v199
        %v317 = vmul.f32 %v315, %v200
        %v318 = vmul.f32 %v315, %v201
        %v322 = vrot.slane %v316, 2
        %v323 = vrot.slane %v317, 2
        %v324 = vsel %vm304, %v322, %v323
        %v325 = vrot.slane %v318, 2
        %v326 = vsel %vm304, %v323, %v325
        %327 = vrot.lane.b32.xlu0 %v324, 127
        %v328 = vpop.permute.xlu0 %327
        %329 = vrot.lane.b32.xlu0 %v326, 127
        %v330 = vpop.permute.xlu0 %329
        %v333 = vadd.f32 %v312, %v328
        %v334 = vadd.f32 %v313, %v330
        %s335 = sld [smem:[#allocation7 + $0x8]]
        %v336 = vstv %s335
        %v337 = vmul.f32 %v336, %v199
        %v338 = vmul.f32 %v336, %v200
        %v339 = vmul.f32 %v336, %v201
        %v343 = vrot.slane %v337, 2
        %v344 = vrot.slane %v338, 2
        %v345 = vsel %vm304, %v343, %v344
        %v346 = vrot.slane %v339, 2
        %v347 = vsel %vm304, %v344, %v346
        %348 = vrot.lane.b32.xlu0 %v345, 126
        %v349 = vpop.permute.xlu0 %348
        %350 = vrot.lane.b32.xlu0 %v347, 126
        %v351 = vpop.permute.xlu0 %350
        %v354 = vadd.f32 %v333, %v349
        %v355 = vadd.f32 %v334, %v351
        %v356 = vsub.f32 0.0, %v354
        %v357 = vsub.f32 0.0, %v355
        %v358 = vmul.f32 %v356, 1.442695
        %v359 = vpow.pop %v358
        %v360 = vmul.f32 %v357, 1.442695
        %v361 = vpow.pop %v360
        %v362 = vadd.f32 %v359, 1.0
        %v363 = vadd.f32 %v361, 1.0
        %v364 = vrcp.pop %v362
        %v365 = vmul.f32 1.0, %v364
        %v366 = vrcp.pop %v363
        %v367 = vmul.f32 1.0, %v366
        %v368 = vadd.f32 %v181, %v365
        %v369 = vadd.f32 %v182, %v367
        %v370 = vld [vmem:[%s150] sm:$0xff]
        %v371 = vld [vmem:[%s150 + $0x8] sm:$0xff]
        %v372 = vld [vmem:[%s150 + $0x10] sm:$0xff]
        %v373 = vld [vmem:[%s150 + $0x18] sm:$0xff]
        %v374 = vld [vmem:[%s150 + $0x20] sm:$0xff]
        %v375 = vld [vmem:[%s150 + $0x28] sm:$0xff]
        %v376 = vld [vmem:[%s150 + $0x30] sm:$0xff]
        %v377 = vld [vmem:[%s150 + $0x38] sm:$0xff]
        %vm378 = vcmask 130048
        %379 = vst.msk [vmem:[%s175] sm:$0xff] %vm378, %v370
        %380 = vst.msk [vmem:[%s175 + $0x8] sm:$0xff] %vm378, %v371
        %381 = vst.msk [vmem:[%s175 + $0x10] sm:$0xff] %vm378, %v372
        %382 = vst.msk [vmem:[%s175 + $0x18] sm:$0xff] %vm378, %v373
        %383 = vst.msk [vmem:[%s175 + $0x20] sm:$0xff] %vm378, %v374
        %384 = vst.msk [vmem:[%s175 + $0x28] sm:$0xff] %vm378, %v375
        %385 = vst.msk [vmem:[%s175 + $0x30] sm:$0xff] %vm378, %v376
        %386 = vst.msk [vmem:[%s175 + $0x38] sm:$0xff] %vm378, %v377
        %s387 = scalar_lea.vmem %s175, 64 [#allocation8]
        %388 = vst.msk [vmem:[%s387] sm:$0xff] %vm378, %v368
        %389 = vst.msk [vmem:[%s387 + $0x8] sm:$0xff] %vm378, %v369
        %s390 = sand.u32 %s75, 1
        %s391 = scalar_lea.sflag [#allocation5], %s390
        %s392 = sand.u32 %s75, 1
        %s393 = smul.addr %s392, 80
        %s394 = scalar_lea.vmem [#allocation8], %s393
        // Predicated region
        $region37: #{tpu_custom_call.1} parent=27 // pred_check
          %p395 = pneg %p85
        $region38: #{tpu_custom_call.1} parent=27 // pred_check_branch
          %397 = sbr.rel (%p395) target = $region40
        $region39: #{tpu_custom_call.1} parent=27 // pred_region
          %s399 = ssub.s32 1280, 1280
          %400 = vsyncadd %s391, %s399
          %s401 = smul.addr %s20, 10
          %s402 = smul.addr %s401, 128
          %s403 = scalar_lea.hbm %s2, %s402
          %s404 = sshll.u32 %s394, 4
          %s405 = int_to_ptr.vmem [resolvable:$true] %s404
          %410 = dma.vmem_to_hbm [thread:$0]  %s405, 1280, %s403, %s391, 128, 128, 8
        $region40: #{tpu_custom_call.1} parent=27 // pred_fallthru
          _
      $region28: #{tpu_custom_call.1} parent=5 // pred_fallthru
        _
      %p411 = scmp.le.s32.totalorder 2, %s15
      // Predicated region
      $region41: #{tpu_custom_call.1} parent=5 // pred_check
        %p412 = pneg %p411
      $region42: #{tpu_custom_call.1} parent=5 // pred_check_branch
        %414 = sbr.rel (%p412) target = $region44
      $region43: #{tpu_custom_call.1} parent=5 // pred_region
        %s415 = ssub.s32 %s15, 2
        // Predicated region
        $region45: #{tpu_custom_call.1} parent=43 // pred_check
          %p416 = pneg %p91
        $region46: #{tpu_custom_call.1} parent=43 // pred_check_branch
          %418 = sbr.rel (%p416) target = $region48
        $region47: #{tpu_custom_call.1} parent=43 // pred_region
          %s419 = sand.u32 %s76, 1
          %s420 = scalar_lea.sflag [#allocation5], %s419
          %s421 = sand.u32 %s76, 1
          %s422 = smul.addr %s421, 80
          %s423 = scalar_lea.vmem [#allocation8], %s422
          %424 = dma.done %s420, 1280
        $region48: #{tpu_custom_call.1} parent=43 // pred_fallthru
          _
      $region44: #{tpu_custom_call.1} parent=5 // pred_fallthru
        _
    $region6: #{tpu_custom_call.1} parent=1 // loop_footer
      %s19 = sadd.s32 1, %s15
    $region7: #{tpu_custom_call.1} parent=1 // loop_footer_branch
      %14 = sbr.rel target = $region3
    $region8: #{tpu_custom_call.1} parent=1 // loop_exit
      _
    %425 = vsyncpa [#allocation4], 1
    %s426 = scalar_lea.sflag [#allocation4], 1
    %427 = vsyncpa %s426, 1
    %428 = vsyncpa [#allocation5], 1
    %s429 = scalar_lea.sflag [#allocation5], 1
    %430 = vsyncpa %s429, 1
    %431 = vsyncpa [#allocation6], 1
    %s432 = scalar_lea.sflag [#allocation6], 1
    %433 = vsyncpa %s432, 1

</llo_original>
